<compile_context>
chip_gen: v5e
topology: v5e:2x2
jax: 0.10.0
libtpu: 0.0.40
codegen_flags: <defaults>
</compile_context>

<pallas_src>
import functools
import math

import jax
import jax.numpy as jnp
from jax.experimental import pallas as pl
from jax.experimental.pallas import tpu as pltpu


def _row_granule(dtype):
    # sublane pack granule: f32 -> 8, bf16 -> 16, int8/fp8 -> 32
    return {4: 8, 2: 16, 1: 32}.get(jnp.dtype(dtype).itemsize, 8)


def _pick_block_m(m, d, dtype, *, target_bytes=2 << 20):
    """VMEM-budget row tile (~2 MiB of input per tile), rounded to the sublane
    granule, shrunk so the 1-D grid has >= 2 roughly-even parallel steps."""
    granule = _row_granule(dtype)
    itemsize = jnp.dtype(dtype).itemsize
    bm = max(granule, (target_bytes // (d * itemsize)) // granule * granule)
    if m > granule:
        half = -(-m // 2)                      # ceil(m / 2)
        half = -(-half // granule) * granule   # round up to granule
        bm = min(bm, max(granule, half))       # >= 2 grid steps (megacore)
    return int(bm)


def _vmem_limit(need_bytes):
    # explicit scoped-VMEM budget with headroom; safe on v5e/v6e/v7x
    return int(min(max(2 * need_bytes + (4 << 20), 32 << 20), 48 << 20))


def _layernorm_kernel(x_ref, g_ref, b_ref, o_ref, *, eps):
    """LayerNorm over the last dim for one (block_m, D) row tile."""
    x = x_ref[...].astype(jnp.float32)
    mean = jnp.mean(x, axis=-1, keepdims=True)
    xc = x - mean
    var = jnp.mean(xc * xc, axis=-1, keepdims=True)   # two-pass variance
    y = xc * jax.lax.rsqrt(var + eps)                 # EUP rsqrt
    o_ref[...] = (y * g_ref[...].astype(jnp.float32)
                  + b_ref[...].astype(jnp.float32)).astype(o_ref.dtype)


def _prenorm_proj_kernel(x_ref, g_ref, b_ref, w_ref, pb_ref, o_ref, *, eps):
    """Fused LayerNorm + (dim -> n) projection for one (block_m, D) row tile."""
    x = x_ref[...].astype(jnp.float32)
    mean = jnp.mean(x, axis=-1, keepdims=True)
    xc = x - mean
    var = jnp.mean(xc * xc, axis=-1, keepdims=True)
    y = xc * jax.lax.rsqrt(var + eps)
    y = y * g_ref[...].astype(jnp.float32) + b_ref[...].astype(jnp.float32)
    acc = jnp.dot(y.astype(w_ref.dtype), w_ref[...],
                  preferred_element_type=jnp.float32)
    o_ref[...] = (acc + pb_ref[...].astype(jnp.float32)).astype(o_ref.dtype)


def layer_norm(x, gamma, beta, *, eps=1e-5):
    """Pallas LayerNorm over the last dim. x: (..., dim)."""
    orig_shape = x.shape
    d = orig_shape[-1]
    m = math.prod(orig_shape[:-1])
    x2 = x.reshape(m, d)

    block_m = _pick_block_m(m, d, x.dtype)
    grid = (pl.cdiv(m, block_m),)

    itemsize = jnp.dtype(x.dtype).itemsize
    need = 2 * (block_m * d * itemsize) * 2 + 2 * d * 4   # 2x dbl-buffered tiles + params
    kernel = functools.partial(_layernorm_kernel, eps=eps)

    out = pl.pallas_call(
        kernel,
        out_shape=jax.ShapeDtypeStruct((m, d), x.dtype),
        grid_spec=pltpu.PrefetchScalarGridSpec(
            num_scalar_prefetch=0,
            grid=grid,
            in_specs=[
                pl.BlockSpec((block_m, d), lambda i: (i, 0)),
                pl.BlockSpec((1, d), lambda i: (0, 0)),
                pl.BlockSpec((1, d), lambda i: (0, 0)),
            ],
            out_specs=pl.BlockSpec((block_m, d), lambda i: (i, 0)),
        ),
        compiler_params=pltpu.CompilerParams(
            dimension_semantics=("parallel",),
            vmem_limit_bytes=_vmem_limit(need)),
    )(x2, gamma.reshape(1, d), beta.reshape(1, d))

    return out.reshape(orig_shape)


def pre_norm_projection(x, gamma, beta, w, b, *, eps=1e-5):
    """Fused PreNorm + linear fn: (LayerNorm(x)) @ w + b in one HBM pass."""
    orig_shape = x.shape
    d = orig_shape[-1]
    n = w.shape[-1]
    m = math.prod(orig_shape[:-1])
    x2 = x.reshape(m, d)

    block_m = _pick_block_m(m, d, x.dtype)
    grid = (pl.cdiv(m, block_m),)

    itemsize = jnp.dtype(x.dtype).itemsize
    need = (2 * block_m * d * itemsize          # double-buffered input tile
            + 2 * block_m * n * itemsize        # double-buffered output tile
            + d * n * jnp.dtype(w.dtype).itemsize
            + (2 * d + n) * 4)
    kernel = functools.partial(_prenorm_proj_kernel, eps=eps)

    out = pl.pallas_call(
        kernel,
        out_shape=jax.ShapeDtypeStruct((m, n), x.dtype),
        grid_spec=pltpu.PrefetchScalarGridSpec(
            num_scalar_prefetch=0,
            grid=grid,
            in_specs=[
                pl.BlockSpec((block_m, d), lambda i: (i, 0)),
                pl.BlockSpec((1, d), lambda i: (0, 0)),
                pl.BlockSpec((1, d), lambda i: (0, 0)),
                pl.BlockSpec((d, n), lambda i: (0, 0)),
                pl.BlockSpec((1, n), lambda i: (0, 0)),
            ],
            out_specs=pl.BlockSpec((block_m, n), lambda i: (i, 0)),
        ),
        compiler_params=pltpu.CompilerParams(
            dimension_semantics=("parallel",),
            vmem_limit_bytes=_vmem_limit(need)),
    )(x2, gamma.reshape(1, d), beta.reshape(1, d), w, b.reshape(1, n))

    return out.reshape(orig_shape[:-1] + (n,))


def pre_norm(x, gamma, beta, fn, *, eps=1e-5, **kwargs):
    """PreNorm.forward: fn(LayerNorm(x), **kwargs) for an arbitrary fn."""
    # TODO(synk): `fn` is an arbitrary wrapped module (attention / FFN in
    # convtransformer); only the common linear-projection case is fused
    # (pre_norm_projection). Generic fn is applied as plain JAX here.
    return fn(layer_norm(x, gamma, beta, eps=eps), **kwargs)


def layer_norm_ref(x, gamma, beta, eps=1e-5):
    """Pure-JAX reference mirroring torch.nn.LayerNorm."""
    mean = jnp.mean(x, axis=-1, keepdims=True)
    var = jnp.mean((x - mean) ** 2, axis=-1, keepdims=True)
    return (x - mean) * jax.lax.rsqrt(var + eps) * gamma + beta


if __name__ == "__main__":
    # Token shapes consistent with PreNorm in convtransformer: (batch, seq, dim)
    # dim = 128 -> lane-dense minor axis; seq chosen so rows (2*60=120) exercise
    # the ragged last block (no pad / slice passes).
    batch, seq, dim = 2, 60, 128

    key = jax.random.PRNGKey(0)
    k1, k2, k3, k4, k5 = jax.random.split(key, 5)

    x = jax.random.normal(k1, (batch, seq, dim), jnp.float32)
    gamma = 1.0 + 0.1 * jax.random.normal(k2, (dim,), jnp.float32)
    beta = 0.1 * jax.random.normal(k3, (dim,), jnp.float32)

    # Wrapped `fn`: a dim->dim projection (the common PreNorm payload shape).
    w = 0.05 * jax.random.normal(k4, (dim, dim), jnp.float32)
    b = 0.05 * jax.random.normal(k5, (dim,), jnp.float32)
    fn = lambda y: jnp.dot(y, w) + b

    # Reference.
    ref = fn(layer_norm_ref(x, gamma, beta))

    # 1) Fused PreNorm + projection kernel (normalized tensor never hits HBM).
    out_fused = jax.block_until_ready(pre_norm_projection(x, gamma, beta, w, b))
    assert out_fused.shape == (batch, seq, dim)
    assert jnp.allclose(out_fused, ref, atol=1e-4, rtol=1e-4)

    # 2) Generic path: Pallas LayerNorm kernel + arbitrary fn as plain JAX.
    out_generic = jax.block_until_ready(pre_norm(x, gamma, beta, fn))
    assert out_generic.shape == (batch, seq, dim)
    assert jnp.allclose(out_generic, ref, atol=1e-4, rtol=1e-4)

    print("KERNEL_OK")
</pallas_src>

<mosaic_0001>
module attributes {stable_mosaic.version = 11 : i64} {
  func.func @_prenorm_proj_kernel(%arg0: i32, %arg1: memref<64x128xf32, #tpu.memory_space<vmem>>, %arg2: memref<1x128xf32, #tpu.memory_space<vmem>>, %arg3: memref<1x128xf32, #tpu.memory_space<vmem>>, %arg4: memref<128x128xf32, #tpu.memory_space<vmem>>, %arg5: memref<1x128xf32, #tpu.memory_space<vmem>>, %arg6: memref<64x128xf32, #tpu.memory_space<vmem>>) attributes {dimension_semantics = [#tpu.dimension_semantics<parallel>], iteration_bounds = array<i64: 2>, scalar_prefetch = 0 : i64, scratch_operands = 0 : i64, tpu.core_type = #tpu.core_type<tc>, window_params = [{transform_indices = @transform_0, window_bounds = array<i64: 64, 128>}, {pipeline_mode = #tpu.pipeline_mode<synchronous>, transform_indices = @transform_1, window_bounds = array<i64: 1, 128>}, {pipeline_mode = #tpu.pipeline_mode<synchronous>, transform_indices = @transform_2, window_bounds = array<i64: 1, 128>}, {pipeline_mode = #tpu.pipeline_mode<synchronous>, transform_indices = @transform_3, window_bounds = array<i64: 128, 128>}, {pipeline_mode = #tpu.pipeline_mode<synchronous>, transform_indices = @transform_4, window_bounds = array<i64: 1, 128>}, {transform_indices = @transform_5, window_bounds = array<i64: 64, 128>}]} {
    %c0 = arith.constant 0 : index
    %c0_0 = arith.constant 0 : index
    %0 = vector.load %arg1[%c0, %c0_0] : memref<64x128xf32, #tpu.memory_space<vmem>>, vector<64x128xf32>
    %cst = arith.constant dense<0.000000e+00> : vector<64xf32>
    %1 = vector.multi_reduction <add>, %0, %cst [1] : vector<64x128xf32> to vector<64xf32>
    %2 = vector.shape_cast %1 : vector<64xf32> to vector<64x1xf32>
    %cst_1 = arith.constant 1.280000e+02 : f32
    %3 = vector.broadcast %cst_1 : f32 to vector<64x1xf32>
    %4 = arith.divf %2, %3 : vector<64x1xf32>
    %5 = vector.broadcast %4 : vector<64x1xf32> to vector<64x128xf32>
    %6 = arith.subf %0, %5 : vector<64x128xf32>
    %7 = arith.mulf %6, %6 : vector<64x128xf32>
    %cst_2 = arith.constant dense<0.000000e+00> : vector<64xf32>
    %8 = vector.multi_reduction <add>, %7, %cst_2 [1] : vector<64x128xf32> to vector<64xf32>
    %9 = vector.shape_cast %8 : vector<64xf32> to vector<64x1xf32>
    %cst_3 = arith.constant 1.280000e+02 : f32
    %10 = vector.broadcast %cst_3 : f32 to vector<64x1xf32>
    %11 = arith.divf %9, %10 : vector<64x1xf32>
    %cst_4 = arith.constant 9.99999974E-6 : f32
    %12 = vector.broadcast %cst_4 : f32 to vector<64x1xf32>
    %13 = arith.addf %11, %12 : vector<64x1xf32>
    %14 = math.rsqrt %13 : vector<64x1xf32>
    %15 = vector.broadcast %14 : vector<64x1xf32> to vector<64x128xf32>
    %16 = arith.mulf %6, %15 : vector<64x128xf32>
    %c0_5 = arith.constant 0 : index
    %c0_6 = arith.constant 0 : index
    %17 = vector.load %arg2[%c0_5, %c0_6] : memref<1x128xf32, #tpu.memory_space<vmem>>, vector<1x128xf32>
    %18 = vector.broadcast %17 : vector<1x128xf32> to vector<64x128xf32>
    %19 = arith.mulf %16, %18 : vector<64x128xf32>
    %c0_7 = arith.constant 0 : index
    %c0_8 = arith.constant 0 : index
    %20 = vector.load %arg3[%c0_7, %c0_8] : memref<1x128xf32, #tpu.memory_space<vmem>>, vector<1x128xf32>
    %21 = vector.broadcast %20 : vector<1x128xf32> to vector<64x128xf32>
    %22 = arith.addf %19, %21 : vector<64x128xf32>
    %c0_9 = arith.constant 0 : index
    %c0_10 = arith.constant 0 : index
    %23 = vector.load %arg4[%c0_9, %c0_10] : memref<128x128xf32, #tpu.memory_space<vmem>>, vector<128x128xf32>
    %cst_11 = arith.constant dense<0.000000e+00> : vector<64x128xf32>
    %24 = tpu.matmul %22, %23, %cst_11 {dimension_numbers = #tpu.dot_dimension_numbers<[1], [0], [0], [1], [0, 0, 1, 1], [], []>} : vector<64x128xf32>, vector<128x128xf32>, vector<64x128xf32> -> vector<64x128xf32>
    %c0_12 = arith.constant 0 : index
    %c0_13 = arith.constant 0 : index
    %25 = vector.load %arg5[%c0_12, %c0_13] : memref<1x128xf32, #tpu.memory_space<vmem>>, vector<1x128xf32>
    %26 = vector.broadcast %25 : vector<1x128xf32> to vector<64x128xf32>
    %27 = arith.addf %24, %26 : vector<64x128xf32>
    %c0_14 = arith.constant 0 : index
    %c0_15 = arith.constant 0 : index
    %28 = vector.load %arg6[%c0_14, %c0_15] : memref<64x128xf32, #tpu.memory_space<vmem>>, vector<64x128xf32>
    tpu.vector_store %arg6[%c0_14, %c0_15], %27 {strides = array<i32>} : memref<64x128xf32, #tpu.memory_space<vmem>>, vector<64x128xf32>,
    return
  }
  func.func @transform_0(%arg0: i32) -> (i32, i32) {
    %c0_i32 = arith.constant 0 : i32
    %c0_i32_0 = arith.constant 0 : i32
    return %arg0, %c0_i32 : i32, i32
  }
  func.func @transform_1(%arg0: i32) -> (i32, i32) {
    %c0_i32 = arith.constant 0 : i32
    %c0_i32_0 = arith.constant 0 : i32
    %c0_i32_1 = arith.constant 0 : i32
    return %c0_i32, %c0_i32_0 : i32, i32
  }
  func.func @transform_2(%arg0: i32) -> (i32, i32) {
    %c0_i32 = arith.constant 0 : i32
    %c0_i32_0 = arith.constant 0 : i32
    %c0_i32_1 = arith.constant 0 : i32
    return %c0_i32, %c0_i32_0 : i32, i32
  }
  func.func @transform_3(%arg0: i32) -> (i32, i32) {
    %c0_i32 = arith.constant 0 : i32
    %c0_i32_0 = arith.constant 0 : i32
    %c0_i32_1 = arith.constant 0 : i32
    return %c0_i32, %c0_i32_0 : i32, i32
  }
  func.func @transform_4(%arg0: i32) -> (i32, i32) {
    %c0_i32 = arith.constant 0 : i32
    %c0_i32_0 = arith.constant 0 : i32
    %c0_i32_1 = arith.constant 0 : i32
    return %c0_i32, %c0_i32_0 : i32, i32
  }
  func.func @transform_5(%arg0: i32) -> (i32, i32) {
    %c0_i32 = arith.constant 0 : i32
    %c0_i32_0 = arith.constant 0 : i32
    return %arg0, %c0_i32 : i32, i32
  }
}

</mosaic_0001>

<llo_original>
// kernel: tpu_custom_call.1
$region0: #{tpu_custom_call.1}
  #allocation0 [shape = 'u32[]', space=smem, size = 0x4, offset = 0x4, fixed_abs, tag = 'smem constant byte address 0x4 - core index']
  #allocation1 [shape = 'u32[72,128]{1,0:T(1,128)}', space=vmem, size = 0x9000, scoped, tag = 'internal scratch']
  %s0 = inlined_call_operand.hbm [shape: f32[120,128], index: 0, kind: input, shape index: {}]
  %s1 = inlined_call_operand.hbm [shape: f32[1,128], index: 1, kind: input, shape index: {}]
  %s2 = inlined_call_operand.vmem [shape: f32[1,128], index: 2, kind: input, shape index: {}]
  %s3 = inlined_call_operand.hbm [shape: f32[128,128], index: 3, kind: input, shape index: {}]
  %s4 = inlined_call_operand.vmem [shape: f32[1,128], index: 4, kind: input, shape index: {}]
  %s5 = inlined_call_operand.hbm [shape: f32[120,128], index: 5, kind: output, shape index: {}]
  %s6 = sld [smem:[#allocation0]]
  $region65: #{tpu_custom_call.1} parent=0
    _
  %s8 = ssub.s32 1, %s6
  %s9 = scalar_select 0, %s8, %s6
  $region1: #{tpu_custom_call.1} parent=0
    #allocation2 [shape = 'u8[65536]{0}', space=vmem, size = 0x10000, scoped, tag = 'input window, operand 0']
    #allocation3 [shape = 's32[2]{0}', space=sflag, size = 0x8, scoped, tag = 'scoped memory for tpu_custom_call.1']
    #allocation4 [shape = 's32[2]{0}', space=sflag, size = 0x8, scoped, tag = 'scoped memory for tpu_custom_call.1']
    #allocation5 [shape = 'u8[512]{0}', space=vmem, size = 0x400, scoped, tag = 'input window, operand 1, single buffered']
    #allocation6 [shape = 's32[1]{0}', space=sflag, size = 0x4, scoped, tag = 'scoped memory for tpu_custom_call.1']
    #allocation7 [shape = 'u8[65536]{0}', space=vmem, size = 0x10000, scoped, tag = 'input window, operand 3, single buffered']
    #allocation8 [shape = 'u8[65536]{0}', space=vmem, size = 0x10000, scoped, tag = 'output window, operand 0']
    %10 = vsyncpa [#allocation3], 0
    %s11 = scalar_lea.sflag [#allocation3], 1
    %12 = vsyncpa %s11, 0
    %13 = vsyncpa [#allocation6], 0
    %14 = vsyncpa [#allocation4], 0
    %s15 = scalar_lea.sflag [#allocation4], 1
    %16 = vsyncpa %s15, 0
    loop: start=0, step=1, limit=4
    $region2: #{tpu_custom_call.1} parent=1 // loop_pre_header
      _
    $region3: #{tpu_custom_call.1} parent=1 // loop_header
      %s18 = sphi 0, %s22
      %p19 = scmp.ge.s32.totalorder %s18, 4
      %s28 = sphi 0, %s30
      %s31 = sphi 0, %s28
      %s32 = sphi 0, %s31
      %s48 = sphi 0, %s32
      %s52 = sphi 0, %s52
      %s54 = sphi 0, %s52
      %s55 = sphi 0, %s54
      %s69 = sphi 0, %s55
      %s73 = sphi 0, %s73
      %s75 = sphi 0, %s73
      %s76 = sphi 0, %s75
      %s90 = sphi 0, %s76
      %s94 = sphi 0, %s94
      %s96 = sphi 0, %s94
      %s97 = sphi 0, %s96
      %s111 = sphi 0, %s97
      %s115 = sphi 0, %s115
      %s117 = sphi 0, %s115
      %s118 = sphi 0, %s117
      %s132 = sphi 0, %s118
      %s138 = sphi 0, %s140
      %s141 = sphi 0, %s138
      %s142 = sphi 0, %s141
      %s158 = sphi 0, %s142
    $region4: #{tpu_custom_call.1} parent=1 // loop_header_branch
      %21 = sbr.rel (%p19) target = $region8
    $region5: #{tpu_custom_call.1} parent=1 // loop_body
      %s23 = ssub.s32 %s18, 1
      %s24 = ssub.s32 %s18, 2
      %s25 = sadd.s32 %s18, 1
      %s26 = ssub.s32 %s18, %s25
      %p27 = scmp.eq.s32.totalorder %s26, 0
      %s29 = sadd.s32 %s28, 1
      %s30 = scalar_select %p27, %s28, %s29
      %p33 = pneg %p27
      %p34 = scmp.eq.s32.totalorder %s18, 1
      %p35 = por %p33, %p34
      %p36 = scmp.ne.s32.totalorder %s28, %s31
      %p37 = scmp.eq.s32.totalorder %s18, 0
      %p38 = por %p36, %p37
      %p39 = scmp.ne.s32.totalorder %s28, %s31
      %p40 = scmp.eq.s32.totalorder %s23, 1
      %p41 = por %p39, %p40
      %p42 = scmp.ne.s32.totalorder %s31, %s32
      %p43 = scmp.eq.s32.totalorder %s23, 0
      %p44 = por %p42, %p43
      %p45 = scmp.ne.s32.totalorder %s31, %s32
      %p46 = scmp.eq.s32.totalorder %s24, 1
      %p47 = por %p45, %p46
      %p49 = scmp.ne.s32.totalorder %s32, %s48
      %p50 = scmp.eq.s32.totalorder %s24, 0
      %p51 = por %p49, %p50
      %s53 = sadd.s32 %s52, 1
      %p56 = scmp.eq.s32.totalorder %s18, 1
      %p57 = scmp.ne.s32.totalorder %s52, %s54
      %p58 = scmp.eq.s32.totalorder %s18, 0
      %p59 = por %p57, %p58
      %p60 = scmp.ne.s32.totalorder %s52, %s54
      %p61 = scmp.eq.s32.totalorder %s23, 1
      %p62 = por %p60, %p61
      %p63 = scmp.ne.s32.totalorder %s54, %s55
      %p64 = scmp.eq.s32.totalorder %s23, 0
      %p65 = por %p63, %p64
      %p66 = scmp.ne.s32.totalorder %s54, %s55
      %p67 = scmp.eq.s32.totalorder %s24, 1
      %p68 = por %p66, %p67
      %p70 = scmp.ne.s32.totalorder %s55, %s69
      %p71 = scmp.eq.s32.totalorder %s24, 0
      %p72 = por %p70, %p71
      %s74 = sadd.s32 %s73, 1
      %p77 = scmp.eq.s32.totalorder %s18, 1
      %p78 = scmp.ne.s32.totalorder %s73, %s75
      %p79 = scmp.eq.s32.totalorder %s18, 0
      %p80 = por %p78, %p79
      %p81 = scmp.ne.s32.totalorder %s73, %s75
      %p82 = scmp.eq.s32.totalorder %s23, 1
      %p83 = por %p81, %p82
      %p84 = scmp.ne.s32.totalorder %s75, %s76
      %p85 = scmp.eq.s32.totalorder %s23, 0
      %p86 = por %p84, %p85
      %p87 = scmp.ne.s32.totalorder %s75, %s76
      %p88 = scmp.eq.s32.totalorder %s24, 1
      %p89 = por %p87, %p88
      %p91 = scmp.ne.s32.totalorder %s76, %s90
      %p92 = scmp.eq.s32.totalorder %s24, 0
      %p93 = por %p91, %p92
      %s95 = sadd.s32 %s94, 1
      %p98 = scmp.eq.s32.totalorder %s18, 1
      %p99 = scmp.ne.s32.totalorder %s94, %s96
      %p100 = scmp.eq.s32.totalorder %s18, 0
      %p101 = por %p99, %p100
      %p102 = scmp.ne.s32.totalorder %s94, %s96
      %p103 = scmp.eq.s32.totalorder %s23, 1
      %p104 = por %p102, %p103
      %p105 = scmp.ne.s32.totalorder %s96, %s97
      %p106 = scmp.eq.s32.totalorder %s23, 0
      %p107 = por %p105, %p106
      %p108 = scmp.ne.s32.totalorder %s96, %s97
      %p109 = scmp.eq.s32.totalorder %s24, 1
      %p110 = por %p108, %p109
      %p112 = scmp.ne.s32.totalorder %s97, %s111
      %p113 = scmp.eq.s32.totalorder %s24, 0
      %p114 = por %p112, %p113
      %s116 = sadd.s32 %s115, 1
      %p119 = scmp.eq.s32.totalorder %s18, 1
      %p120 = scmp.ne.s32.totalorder %s115, %s117
      %p121 = scmp.eq.s32.totalorder %s18, 0
      %p122 = por %p120, %p121
      %p123 = scmp.ne.s32.totalorder %s115, %s117
      %p124 = scmp.eq.s32.totalorder %s23, 1
      %p125 = por %p123, %p124
      %p126 = scmp.ne.s32.totalorder %s117, %s118
      %p127 = scmp.eq.s32.totalorder %s23, 0
      %p128 = por %p126, %p127
      %p129 = scmp.ne.s32.totalorder %s117, %s118
      %p130 = scmp.eq.s32.totalorder %s24, 1
      %p131 = por %p129, %p130
      %p133 = scmp.ne.s32.totalorder %s118, %s132
      %p134 = scmp.eq.s32.totalorder %s24, 0
      %p135 = por %p133, %p134
      %s136 = ssub.s32 %s18, %s25
      %p137 = scmp.eq.s32.totalorder %s136, 0
      %s139 = sadd.s32 %s138, 1
      %s140 = scalar_select %p137, %s138, %s139
      %p143 = pneg %p137
      %p144 = scmp.eq.s32.totalorder %s18, 1
      %p145 = por %p143, %p144
      %p146 = scmp.ne.s32.totalorder %s138, %s141
      %p147 = scmp.eq.s32.totalorder %s18, 0
      %p148 = por %p146, %p147
      %p149 = scmp.ne.s32.totalorder %s138, %s141
      %p150 = scmp.eq.s32.totalorder %s23, 1
      %p151 = por %p149, %p150
      %p152 = scmp.ne.s32.totalorder %s141, %s142
      %p153 = scmp.eq.s32.totalorder %s23, 0
      %p154 = por %p152, %p153
      %p155 = scmp.ne.s32.totalorder %s141, %s142
      %p156 = scmp.eq.s32.totalorder %s24, 1
      %p157 = por %p155, %p156
      %p159 = scmp.ne.s32.totalorder %s142, %s158
      %p160 = scmp.eq.s32.totalorder %s24, 0
      %p161 = por %p159, %p160
      %p162 = scmp.le.s32.totalorder 1, %s18
      %p163 = scmp.lt.s32.totalorder %s18, 3
      %p164 = pnand %p162, %p163
      %p165 = pneg %p164
      // Predicated region
      $region9: #{tpu_custom_call.1} parent=5 // pred_check
        _
      $region10: #{tpu_custom_call.1} parent=5 // pred_check_branch
        %167 = sbr.rel (%p164) target = $region12
      $region11: #{tpu_custom_call.1} parent=5 // pred_region
        %s168 = ssub.s32 %s18, 1
        // Predicated region
        $region13: #{tpu_custom_call.1} parent=11 // pred_check
          %p169 = pneg %p65
        $region14: #{tpu_custom_call.1} parent=11 // pred_check_branch
          %171 = sbr.rel (%p169) target = $region16
        $region15: #{tpu_custom_call.1} parent=11 // pred_region
          %173 = vsyncadd [#allocation6], 0
          %s175 = sshll.u32 %s1, 4
          %s176 = int_to_ptr.hbm [resolvable:$true] %s175
          %s177 = sshll.u32 [#allocation5], 4
          %s178 = int_to_ptr.vmem [resolvable:$true] %s177
          %180 = dma.hbm_to_vmem [thread:$0]  %s176, 16, %s178, [#allocation6]
        $region16: #{tpu_custom_call.1} parent=11 // pred_fallthru
          _
        // Predicated region
        $region17: #{tpu_custom_call.1} parent=11 // pred_check
          %p181 = pneg %p86
        $region18: #{tpu_custom_call.1} parent=11 // pred_check_branch
          %183 = sbr.rel (%p181) target = $region20
        $region19: #{tpu_custom_call.1} parent=11 // pred_region
          _
        $region20: #{tpu_custom_call.1} parent=11 // pred_fallthru
          _
        // Predicated region
        $region21: #{tpu_custom_call.1} parent=11 // pred_check
          %p184 = pneg %p107
        $region22: #{tpu_custom_call.1} parent=11 // pred_check_branch
          %186 = sbr.rel (%p184) target = $region24
        $region23: #{tpu_custom_call.1} parent=11 // pred_region
          %188 = vsyncadd [#allocation6], 0
          %s189 = sshll.u32 %s3, 4
          %s190 = int_to_ptr.hbm [resolvable:$true] %s189
          %s191 = sshll.u32 [#allocation7], 4
          %s192 = int_to_ptr.vmem [resolvable:$true] %s191
          %197 = dma.hbm_to_vmem [thread:$0]  %s190, 2048, %s192, [#allocation6], 128, 128, 8
        $region24: #{tpu_custom_call.1} parent=11 // pred_fallthru
          _
        // Predicated region
        $region25: #{tpu_custom_call.1} parent=11 // pred_check
          %p198 = pneg %p128
        $region26: #{tpu_custom_call.1} parent=11 // pred_check_branch
          %200 = sbr.rel (%p198) target = $region28
        $region27: #{tpu_custom_call.1} parent=11 // pred_region
          _
        $region28: #{tpu_custom_call.1} parent=11 // pred_fallthru
          _
      $region12: #{tpu_custom_call.1} parent=5 // pred_fallthru
        _
      %p201 = scmp.lt.s32.totalorder %s18, 2
      // Predicated region
      $region29: #{tpu_custom_call.1} parent=5 // pred_check
        %p202 = pneg %p201
      $region30: #{tpu_custom_call.1} parent=5 // pred_check_branch
        %204 = sbr.rel (%p202) target = $region32
      $region31: #{tpu_custom_call.1} parent=5 // pred_region
        // Predicated region
        $region33: #{tpu_custom_call.1} parent=31 // pred_check
          %p205 = pneg %p38
        $region34: #{tpu_custom_call.1} parent=31 // pred_check_branch
          %207 = sbr.rel (%p205) target = $region36
        $region35: #{tpu_custom_call.1} parent=31 // pred_region
          %s208 = sand.u32 %s28, 1
          %s209 = scalar_lea.sflag [#allocation3], %s208
          %s210 = sand.u32 %s28, 1
          %s211 = smul.addr %s210, 64
          %s212 = scalar_lea.vmem [#allocation2], %s211
          %s213 = smul.u32 8, %s18
          %s214 = ssub.s32 15, %s213
          %p215 = scmp.lt.s32.totalorder %s214, 8
          %s216 = scalar_select %p215, %s214, 8
          %s217 = smul.u32 8, %s216
          %s218 = ssub.s32 64, %s217
          %s219 = sshll.u32 %s218, 4
          %220 = vsyncadd %s209, %s219
          %p221 = scmp.ne.s32.totalorder 0, %s217
          %s222 = smul.addr %s213, 8
          %s223 = scalar_lea.hbm %s0, %s222
          %s224 = smul.u32 8, %s216
          %s225 = sshll.u32 %s223, 4
          %s226 = int_to_ptr.hbm [resolvable:$true] %s225
          %s227 = sshll.u32 %s212, 4
          %s228 = int_to_ptr.vmem [resolvable:$true] %s227
          %s229 = sshll.u32 %s224, 4
          %233 = dma.hbm_to_vmem [thread:$0]  (%p221), %s226, %s229, %s228, %s209, 128, 128, 8
        $region36: #{tpu_custom_call.1} parent=31 // pred_fallthru
          _
      $region32: #{tpu_custom_call.1} parent=5 // pred_fallthru
        _
      %p234 = scmp.le.s32.totalorder 1, %s18
      %p235 = scmp.lt.s32.totalorder %s18, 3
      %p236 = pnand %p234, %p235
      %p237 = pneg %p236
      // Predicated region
      $region37: #{tpu_custom_call.1} parent=5 // pred_check
        _
      $region38: #{tpu_custom_call.1} parent=5 // pred_check_branch
        %239 = sbr.rel (%p236) target = $region40
      $region39: #{tpu_custom_call.1} parent=5 // pred_region
        %s240 = ssub.s32 %s18, 1
        %s241 = sand.u32 %s31, 1
        %s242 = scalar_lea.sflag [#allocation3], %s241
        %s243 = sand.u32 %s31, 1
        %s244 = smul.addr %s243, 64
        %s245 = scalar_lea.vmem [#allocation2], %s244
        // Predicated region
        $region41: #{tpu_custom_call.1} parent=39 // pred_check
          %p246 = pneg %p44
        $region42: #{tpu_custom_call.1} parent=39 // pred_check_branch
          %248 = sbr.rel (%p246) target = $region44
        $region43: #{tpu_custom_call.1} parent=39 // pred_region
          %250 = dma.done %s242, 1024
        $region44: #{tpu_custom_call.1} parent=39 // pred_fallthru
          _
        // Predicated region
        $region45: #{tpu_custom_call.1} parent=39 // pred_check
          %p251 = pneg %p65
        $region46: #{tpu_custom_call.1} parent=39 // pred_check_branch
          %253 = sbr.rel (%p251) target = $region48
        $region47: #{tpu_custom_call.1} parent=39 // pred_region
          %255 = dma.done [#allocation6], 16
        $region48: #{tpu_custom_call.1} parent=39 // pred_fallthru
          _
        // Predicated region
        $region49: #{tpu_custom_call.1} parent=39 // pred_check
          %p256 = pneg %p107
        $region50: #{tpu_custom_call.1} parent=39 // pred_check_branch
          %258 = sbr.rel (%p256) target = $region52
        $region51: #{tpu_custom_call.1} parent=39 // pred_region
          %260 = dma.done [#allocation6], 2048
        $region52: #{tpu_custom_call.1} parent=39 // pred_fallthru
          _
        %s261 = sand.u32 %s31, 1
        %s262 = scalar_lea.sflag [#allocation3], %s261
        %s263 = sand.u32 %s31, 1
        %s264 = smul.addr %s263, 64
        %s265 = scalar_lea.vmem [#allocation2], %s264
        %p266 = pneg %p44
        %p267 = pneg %p41
        %p268 = pneg %p65
        %p269 = pneg %p62
        %p270 = pneg %p86
        %p271 = pneg %p83
        %p272 = pneg %p107
        %p273 = pneg %p104
        %p274 = pneg %p128
        %p275 = pneg %p125
        %p276 = pneg %p154
        %p277 = pneg %p151
        %s278 = sand.u32 %s141, 1
        %s279 = scalar_lea.sflag [#allocation4], %s278
        %s280 = sand.u32 %s141, 1
        %s281 = smul.addr %s280, 64
        %s282 = scalar_lea.vmem [#allocation8], %s281
        %s283 = smul.u32 8, %s23
        %s284 = ssub.s32 15, %s283
        %p285 = scmp.lt.s32.totalorder %s284, 8
        %s286 = scalar_select %p285, %s284, 8
        %s287 = smul.u32 8, %s286
        %s288 = smul.u32 8, %s23
        %s289 = ssub.s32 15, %s288
        %p290 = scmp.lt.s32.totalorder %s289, 8
        %s291 = scalar_select %p290, %s289, 8
        %s292 = smul.u32 8, %s291
        %v293 = vld [vmem:[%s245] sm:$0xff]
        %v294 = vld [vmem:[%s245 + $0x8] sm:$0xff]
        %v295 = vld [vmem:[%s245 + $0x10] sm:$0xff]
        %v296 = vld [vmem:[%s245 + $0x18] sm:$0xff]
        %v297 = vld [vmem:[%s245 + $0x20] sm:$0xff]
        %v298 = vld [vmem:[%s245 + $0x28] sm:$0xff]
        %v299 = vld [vmem:[%s245 + $0x30] sm:$0xff]
        %v300 = vld [vmem:[%s245 + $0x38] sm:$0xff]
        %301 = vadd.xlane.f32.xlu0 %v293
        %v302 = vpop.xlane.xlu0 %301
        %303 = vadd.xlane.f32.xlu0 %v294
        %v304 = vpop.xlane.xlu0 %303
        %305 = vadd.xlane.f32.xlu0 %v295
        %v306 = vpop.xlane.xlu0 %305
        %307 = vadd.xlane.f32.xlu0 %v296
        %v308 = vpop.xlane.xlu0 %307
        %309 = vadd.xlane.f32.xlu0 %v297
        %v310 = vpop.xlane.xlu0 %309
        %311 = vadd.xlane.f32.xlu0 %v298
        %v312 = vpop.xlane.xlu0 %311
        %313 = vadd.xlane.f32.xlu0 %v299
        %v314 = vpop.xlane.xlu0 %313
        %315 = vadd.xlane.f32.xlu0 %v300
        %v316 = vpop.xlane.xlu0 %315
        %v317 = vrcp.pop 128.0
        %v318 = vmul.f32 128.0, %v317
        %v319 = vsub.f32 1.0, %v318
        %v320 = vmul.f32 %v317, %v319
        %v321 = vadd.f32 %v317, %v320
        %vm322 = vweird.f32 %v317
        %v323 = vsel %vm322, %v317, %v321
        %v324 = vmul.f32 %v302, %v323
        %v325 = vmul.f32 %v304, %v323
        %v326 = vmul.f32 %v306, %v323
        %v327 = vmul.f32 %v308, %v323
        %v328 = vmul.f32 %v310, %v323
        %v329 = vmul.f32 %v312, %v323
        %v330 = vmul.f32 %v314, %v323
        %v331 = vmul.f32 %v316, %v323
        %v332 = vsub.f32 %v293, %v324
        %v333 = vsub.f32 %v294, %v325
        %v334 = vsub.f32 %v295, %v326
        %v335 = vsub.f32 %v296, %v327
        %v336 = vsub.f32 %v297, %v328
        %v337 = vsub.f32 %v298, %v329
        %v338 = vsub.f32 %v299, %v330
        %v339 = vsub.f32 %v300, %v331
        %v340 = vmul.f32 %v332, %v332
        %v341 = vmul.f32 %v333, %v333
        %v342 = vmul.f32 %v334, %v334
        %v343 = vmul.f32 %v335, %v335
        %v344 = vmul.f32 %v336, %v336
        %v345 = vmul.f32 %v337, %v337
        %v346 = vmul.f32 %v338, %v338
        %v347 = vmul.f32 %v339, %v339
        %348 = vadd.xlane.f32.xlu0 %v340
        %v349 = vpop.xlane.xlu0 %348
        %350 = vadd.xlane.f32.xlu0 %v341
        %v351 = vpop.xlane.xlu0 %350
        %352 = vadd.xlane.f32.xlu0 %v342
        %v353 = vpop.xlane.xlu0 %352
        %354 = vadd.xlane.f32.xlu0 %v343
        %v355 = vpop.xlane.xlu0 %354
        %356 = vadd.xlane.f32.xlu0 %v344
        %v357 = vpop.xlane.xlu0 %356
        %358 = vadd.xlane.f32.xlu0 %v345
        %v359 = vpop.xlane.xlu0 %358
        %360 = vadd.xlane.f32.xlu0 %v346
        %v361 = vpop.xlane.xlu0 %360
        %362 = vadd.xlane.f32.xlu0 %v347
        %v363 = vpop.xlane.xlu0 %362
        %v364 = vmul.f32 %v349, %v323
        %v365 = vmul.f32 %v351, %v323
        %v366 = vmul.f32 %v353, %v323
        %v367 = vmul.f32 %v355, %v323
        %v368 = vmul.f32 %v357, %v323
        %v369 = vmul.f32 %v359, %v323
        %v370 = vmul.f32 %v361, %v323
        %v371 = vmul.f32 %v363, %v323
        %v372 = vadd.f32 %v364, 1e-05
        %v373 = vadd.f32 %v365, 1e-05
        %v374 = vadd.f32 %v366, 1e-05
        %v375 = vadd.f32 %v367, 1e-05
        %v376 = vadd.f32 %v368, 1e-05
        %v377 = vadd.f32 %v369, 1e-05
        %v378 = vadd.f32 %v370, 1e-05
        %v379 = vadd.f32 %v371, 1e-05
        %v380 = vrsqrt.pop %v372
        %v381 = vmul.f32 %v380, %v372
        %v382 = vmul.f32 %v381, %v380
        %v383 = vmul.f32 0.5, %v382
        %v384 = vsub.f32 1.5, %v383
        %v385 = vmul.f32 %v380, %v384
        %vm386 = vweird.f32 %v372
        %vm387 = vweird.f32 %v380
        %vm388 = vmor %vm386, %vm387
        %v389 = vsel %vm388, %v380, %v385
        %v390 = vrsqrt.pop %v373
        %v391 = vmul.f32 %v390, %v373
        %v392 = vmul.f32 %v391, %v390
        %v393 = vmul.f32 0.5, %v392
        %v394 = vsub.f32 1.5, %v393
        %v395 = vmul.f32 %v390, %v394
        %vm396 = vweird.f32 %v373
        %vm397 = vweird.f32 %v390
        %vm398 = vmor %vm396, %vm397
        %v399 = vsel %vm398, %v390, %v395
        %v400 = vrsqrt.pop %v374
        %v401 = vmul.f32 %v400, %v374
        %v402 = vmul.f32 %v401, %v400
        %v403 = vmul.f32 0.5, %v402
        %v404 = vsub.f32 1.5, %v403
        %v405 = vmul.f32 %v400, %v404
        %vm406 = vweird.f32 %v374
        %vm407 = vweird.f32 %v400
        %vm408 = vmor %vm406, %vm407
        %v409 = vsel %vm408, %v400, %v405
        %v410 = vrsqrt.pop %v375
        %v411 = vmul.f32 %v410, %v375
        %v412 = vmul.f32 %v411, %v410
        %v413 = vmul.f32 0.5, %v412
        %v414 = vsub.f32 1.5, %v413
        %v415 = vmul.f32 %v410, %v414
        %vm416 = vweird.f32 %v375
        %vm417 = vweird.f32 %v410
        %vm418 = vmor %vm416, %vm417
        %v419 = vsel %vm418, %v410, %v415
        %v420 = vrsqrt.pop %v376
        %v421 = vmul.f32 %v420, %v376
        %v422 = vmul.f32 %v421, %v420
        %v423 = vmul.f32 0.5, %v422
        %v424 = vsub.f32 1.5, %v423
        %v425 = vmul.f32 %v420, %v424
        %vm426 = vweird.f32 %v376
        %vm427 = vweird.f32 %v420
        %vm428 = vmor %vm426, %vm427
        %v429 = vsel %vm428, %v420, %v425
        %v430 = vrsqrt.pop %v377
        %v431 = vmul.f32 %v430, %v377
        %v432 = vmul.f32 %v431, %v430
        %v433 = vmul.f32 0.5, %v432
        %v434 = vsub.f32 1.5, %v433
        %v435 = vmul.f32 %v430, %v434
        %vm436 = vweird.f32 %v377
        %vm437 = vweird.f32 %v430
        %vm438 = vmor %vm436, %vm437
        %v439 = vsel %vm438, %v430, %v435
        %v440 = vrsqrt.pop %v378
        %v441 = vmul.f32 %v440, %v378
        %v442 = vmul.f32 %v441, %v440
        %v443 = vmul.f32 0.5, %v442
        %v444 = vsub.f32 1.5, %v443
        %v445 = vmul.f32 %v440, %v444
        %vm446 = vweird.f32 %v378
        %vm447 = vweird.f32 %v440
        %vm448 = vmor %vm446, %vm447
        %v449 = vsel %vm448, %v440, %v445
        %v450 = vrsqrt.pop %v379
        %v451 = vmul.f32 %v450, %v379
        %v452 = vmul.f32 %v451, %v450
        %v453 = vmul.f32 0.5, %v452
        %v454 = vsub.f32 1.5, %v453
        %v455 = vmul.f32 %v450, %v454
        %vm456 = vweird.f32 %v379
        %vm457 = vweird.f32 %v450
        %vm458 = vmor %vm456, %vm457
        %v459 = vsel %vm458, %v450, %v455
        %v460 = vmul.f32 %v332, %v389
        %v461 = vmul.f32 %v333, %v399
        %v462 = vmul.f32 %v334, %v409
        %v463 = vmul.f32 %v335, %v419
        %v464 = vmul.f32 %v336, %v429
        %v465 = vmul.f32 %v337, %v439
        %v466 = vmul.f32 %v338, %v449
        %v467 = vmul.f32 %v339, %v459
        %v468 = vld [vmem:[#allocation5] sm:$0x1]
        %v470 = vperm.slane %v468, 0
        %v472 = vmul.f32 %v460, %v470
        %v473 = vmul.f32 %v461, %v470
        %v474 = vmul.f32 %v462, %v470
        %v475 = vmul.f32 %v463, %v470
        %v476 = vmul.f32 %v464, %v470
        %v477 = vmul.f32 %v465, %v470
        %v478 = vmul.f32 %v466, %v470
        %v479 = vmul.f32 %v467, %v470
        %v480 = vld [vmem:[%s2] sm:$0x1]
        %v482 = vperm.slane %v480, 0
        %v484 = vadd.f32 %v472, %v482
        %v485 = vadd.f32 %v473, %v482
        %v486 = vadd.f32 %v474, %v482
        %v487 = vadd.f32 %v475, %v482
        %v488 = vadd.f32 %v476, %v482
        %v489 = vadd.f32 %v477, %v482
        %v490 = vadd.f32 %v478, %v482
        %v491 = vadd.f32 %v479, %v482
        %v492 = vld [vmem:[#allocation7] sm:$0xff]
        %v493 = vld [vmem:[#allocation7 + $0x8] sm:$0xff]
        %v494 = vld [vmem:[#allocation7 + $0x10] sm:$0xff]
        %v495 = vld [vmem:[#allocation7 + $0x18] sm:$0xff]
        %v496 = vld [vmem:[#allocation7 + $0x20] sm:$0xff]
        %v497 = vld [vmem:[#allocation7 + $0x28] sm:$0xff]
        %v498 = vld [vmem:[#allocation7 + $0x30] sm:$0xff]
        %v499 = vld [vmem:[#allocation7 + $0x38] sm:$0xff]
        %v500 = vld [vmem:[#allocation7 + $0x40] sm:$0xff]
        %v501 = vld [vmem:[#allocation7 + $0x48] sm:$0xff]
        %v502 = vld [vmem:[#allocation7 + $0x50] sm:$0xff]
        %v503 = vld [vmem:[#allocation7 + $0x58] sm:$0xff]
        %v504 = vld [vmem:[#allocation7 + $0x60] sm:$0xff]
        %v505 = vld [vmem:[#allocation7 + $0x68] sm:$0xff]
        %v506 = vld [vmem:[#allocation7 + $0x70] sm:$0xff]
        %v507 = vld [vmem:[#allocation7 + $0x78] sm:$0xff]
        %v508 = vld [vmem:[%s4] sm:$0x1]
        %v510 = vperm.slane %v508, 0
        %512 = vmatpush.msra.mxu0 %v507
        %513 = vmatpush.msra.mxu0 %v506
        %514 = vmatpush.msra.mxu0 %v505
        %515 = vmatpush.msra.mxu0 %v504
        %516 = vmatpush.msra.mxu0 %v503
        %517 = vmatpush.msra.mxu0 %v502
        %518 = vmatpush.msra.mxu0 %v501
        %519 = vmatpush.msra.mxu0 %v500
        %520 = vmatpush.msra.mxu0 %v499
        %521 = vmatpush.msra.mxu0 %v498
        %522 = vmatpush.msra.mxu0 %v497
        %523 = vmatpush.msra.mxu0 %v496
        %524 = vmatpush.msra.mxu0 %v495
        %525 = vmatpush.msra.mxu0 %v494
        %526 = vmatpush.msra.mxu0 %v493
        %527 = vmatpush.msra.mxu0 %v492
        %528 = vmatmul.f32.gmra.mxu0 %v484
        %v529 = vpop.f32.mrf.mxu0
        %v530 = vadd.f32 %v510, %v529
        %531 = vmatmul.f32.gmra.mxu0 %v485
        %v532 = vpop.f32.mrf.mxu0
        %v533 = vadd.f32 %v510, %v532
        %534 = vmatmul.f32.gmra.mxu0 %v486
        %v535 = vpop.f32.mrf.mxu0
        %v536 = vadd.f32 %v510, %v535
        %537 = vmatmul.f32.gmra.mxu0 %v487
        %v538 = vpop.f32.mrf.mxu0
        %v539 = vadd.f32 %v510, %v538
        %540 = vmatmul.f32.gmra.mxu0 %v488
        %v541 = vpop.f32.mrf.mxu0
        %v542 = vadd.f32 %v510, %v541
        %543 = vmatmul.f32.gmra.mxu0 %v489
        %v544 = vpop.f32.mrf.mxu0
        %v545 = vadd.f32 %v510, %v544
        %546 = vmatmul.f32.gmra.mxu0 %v490
        %v547 = vpop.f32.mrf.mxu0
        %v548 = vadd.f32 %v510, %v547
        %549 = vmatmul.f32.gmra.mxu0 %v491
        %v550 = vpop.f32.mrf.mxu0
        %v551 = vadd.f32 %v510, %v550
        %552 = vdwg.mxu0
        %553 = vst [vmem:[%s282] sm:$0xff] %v530
        %554 = vst [vmem:[%s282 + $0x8] sm:$0xff] %v533
        %555 = vst [vmem:[%s282 + $0x10] sm:$0xff] %v536
        %556 = vst [vmem:[%s282 + $0x18] sm:$0xff] %v539
        %557 = vst [vmem:[%s282 + $0x20] sm:$0xff] %v542
        %558 = vst [vmem:[%s282 + $0x28] sm:$0xff] %v545
        %559 = vst [vmem:[%s282 + $0x30] sm:$0xff] %v548
        %560 = vst [vmem:[%s282 + $0x38] sm:$0xff] %v551
        %s561 = sand.u32 %s141, 1
        %s562 = scalar_lea.sflag [#allocation4], %s561
        %s563 = sand.u32 %s141, 1
        %s564 = smul.addr %s563, 64
        %s565 = scalar_lea.vmem [#allocation8], %s564
        // Predicated region
        $region53: #{tpu_custom_call.1} parent=39 // pred_check
          %p566 = pneg %p151
        $region54: #{tpu_custom_call.1} parent=39 // pred_check_branch
          %568 = sbr.rel (%p566) target = $region56
        $region55: #{tpu_custom_call.1} parent=39 // pred_region
          %s569 = smul.u32 8, %s23
          %s570 = ssub.s32 15, %s569
          %p571 = scmp.lt.s32.totalorder %s570, 8
          %s572 = scalar_select %p571, %s570, 8
          %s573 = smul.u32 8, %s572
          %s574 = ssub.s32 64, %s573
          %s575 = sshll.u32 %s574, 4
          %576 = vsyncadd %s562, %s575
          %p577 = scmp.ne.s32.totalorder 0, %s573
          %s578 = smul.addr %s569, 8
          %s579 = scalar_lea.hbm %s5, %s578
          %s580 = smul.u32 8, %s572
          %s581 = sshll.u32 %s565, 4
          %s582 = int_to_ptr.vmem [resolvable:$true] %s581
          %s583 = sshll.u32 %s579, 4
          %s584 = int_to_ptr.hbm [resolvable:$true] %s583
          %s585 = sshll.u32 %s580, 4
          %589 = dma.vmem_to_hbm [thread:$0]  (%p577), %s582, %s585, %s584, %s562, 128, 128, 8
        $region56: #{tpu_custom_call.1} parent=39 // pred_fallthru
          _
      $region40: #{tpu_custom_call.1} parent=5 // pred_fallthru
        _
      %p590 = scmp.le.s32.totalorder 2, %s18
      // Predicated region
      $region57: #{tpu_custom_call.1} parent=5 // pred_check
        %p591 = pneg %p590
      $region58: #{tpu_custom_call.1} parent=5 // pred_check_branch
        %593 = sbr.rel (%p591) target = $region60
      $region59: #{tpu_custom_call.1} parent=5 // pred_region
        %s594 = ssub.s32 %s18, 2
        // Predicated region
        $region61: #{tpu_custom_call.1} parent=59 // pred_check
          %p595 = pneg %p157
        $region62: #{tpu_custom_call.1} parent=59 // pred_check_branch
          %597 = sbr.rel (%p595) target = $region64
        $region63: #{tpu_custom_call.1} parent=59 // pred_region
          %s598 = sand.u32 %s142, 1
          %s599 = scalar_lea.sflag [#allocation4], %s598
          %s600 = sand.u32 %s142, 1
          %s601 = smul.addr %s600, 64
          %s602 = scalar_lea.vmem [#allocation8], %s601
          %604 = dma.done %s599, 1024
        $region64: #{tpu_custom_call.1} parent=59 // pred_fallthru
          _
      $region60: #{tpu_custom_call.1} parent=5 // pred_fallthru
        _
    $region6: #{tpu_custom_call.1} parent=1 // loop_footer
      %s22 = sadd.s32 1, %s18
    $region7: #{tpu_custom_call.1} parent=1 // loop_footer_branch
      %17 = sbr.rel target = $region3
    $region8: #{tpu_custom_call.1} parent=1 // loop_exit
      _
    %605 = vsyncpa [#allocation3], 1
    %s606 = scalar_lea.sflag [#allocation3], 1
    %607 = vsyncpa %s606, 1
    %608 = vsyncpa [#allocation6], 1
    %609 = vsyncpa [#allocation4], 1
    %s610 = scalar_lea.sflag [#allocation4], 1
    %611 = vsyncpa %s610, 1

</llo_original>
